<compile_context>
chip_gen: v7x
topology: tpu7x:2x2x1
jax: 0.10.0
libtpu: 0.0.40
codegen_flags: <defaults>
</compile_context>

<pallas_src>
import jax
import jax.numpy as jnp
from jax.experimental import pallas as pl
from jax.experimental.pallas import tpu as pltpu


def lstm_cell_kernel(z_ref, c_ref, w_ref, b_ref, h_out_ref, c_out_ref):
    """z = [x_t | h_t] (B, I+H); w = fused gate weights (I+H, 4H); b = (1, 4H)."""
    H = c_ref.shape[-1]

    z = z_ref[...]
    c = c_ref[...]

    # Single lane-dense MXU matmul for all four gates: (B, I+H) @ (I+H, 4H).
    pre = jnp.dot(z, w_ref[...], preferred_element_type=jnp.float32) + b_ref[...]

    # Gate order matches the fused weight packing: i, f, g, o.
    i_t = jax.nn.sigmoid(pre[:, 0 * H:1 * H])
    f_t = jax.nn.sigmoid(pre[:, 1 * H:2 * H])
    g_t = jnp.tanh(pre[:, 2 * H:3 * H])
    o_t = jax.nn.sigmoid(pre[:, 3 * H:4 * H])

    c_new = f_t * c + i_t * g_t
    h_new = o_t * jnp.tanh(c_new)

    h_out_ref[...] = h_new.astype(h_out_ref.dtype)
    c_out_ref[...] = c_new.astype(c_out_ref.dtype)


def pack_params(params, hidden_size):
    """Stack per-gate (W, U, b) into one fused weight / bias slab.

    Returns W_fused (I+H, 4H) and b_fused (1, 4H) with gate order i, f, g, o.
    """
    H = hidden_size

    def gate_w(g):
        # [W_g ; U_g] -> (I+H, H) so it multiplies z = [x | h].
        return jnp.concatenate([params[f"W_{g}"], params[f"U_{g}"]], axis=0)

    gates = ("i", "f", "g", "o")
    W_fused = jnp.concatenate([gate_w(g) for g in gates], axis=1)          # (I+H, 4H)
    b_fused = jnp.concatenate([params[f"b_{g}"] for g in gates]).reshape(1, 4 * H)
    return W_fused, b_fused


def lstm_cell(x_t, h_t, c_t, params):
    """params: dict with W_i,U_i,b_i, W_f,U_f,b_f, W_g,U_g,b_g, W_o,U_o,b_o."""
    B, I = x_t.shape
    H = h_t.shape[1]

    W_fused, b_fused = pack_params(params, H)
    z = jnp.concatenate([x_t, h_t], axis=1)                                # (B, I+H)

    # Advisory cost estimate: one (B, I+H, 4H) matmul + elementwise gate math.
    flops = 2 * B * (I + H) * (4 * H) + 10 * B * H
    transcendentals = 6 * B * H  # 4 sigmoids + 2 tanh
    bytes_accessed = 4 * (z.size + c_t.size + W_fused.size + b_fused.size + 2 * B * H)

    vmem_spec = pl.BlockSpec(memory_space=pltpu.MemorySpace.VMEM)

    h_new, c_new = pl.pallas_call(
        lstm_cell_kernel,
        out_shape=(
            jax.ShapeDtypeStruct((B, H), jnp.float32),
            jax.ShapeDtypeStruct((B, H), jnp.float32),
        ),
        in_specs=[vmem_spec, vmem_spec, vmem_spec, vmem_spec],
        out_specs=(vmem_spec, vmem_spec),
        # Reuse c_t's HBM buffer for the new cell state (input 1 -> output 1).
        input_output_aliases={1: 1},
        cost_estimate=pl.CostEstimate(
            flops=flops,
            transcendentals=transcendentals,
            bytes_accessed=bytes_accessed,
        ),
    )(z, c_t, W_fused, b_fused)
    return h_new, c_new


def xavier_uniform(key, shape, dtype=jnp.float32):
    fan_in, fan_out = shape[0], shape[1]
    bound = jnp.sqrt(6.0 / (fan_in + fan_out))
    return jax.random.uniform(key, shape, dtype, minval=-bound, maxval=bound)


def init_params(key, input_size, hidden_size):
    params = {}
    gate_names = ["i", "f", "g", "o"]
    keys = jax.random.split(key, 8)
    k = 0
    for g in gate_names:
        params[f"W_{g}"] = xavier_uniform(keys[k], (input_size, hidden_size)); k += 1
        params[f"U_{g}"] = xavier_uniform(keys[k], (hidden_size, hidden_size)); k += 1
        params[f"b_{g}"] = jnp.zeros((hidden_size,), jnp.float32)  # zeros_, like the module
    return params


def lstm_cell_reference(x_t, h_t, c_t, p):
    def pre(w, u, b):
        return x_t @ w + h_t @ u + b
    i_t = jax.nn.sigmoid(pre(p["W_i"], p["U_i"], p["b_i"]))
    f_t = jax.nn.sigmoid(pre(p["W_f"], p["U_f"], p["b_f"]))
    g_t = jnp.tanh(pre(p["W_g"], p["U_g"], p["b_g"]))
    o_t = jax.nn.sigmoid(pre(p["W_o"], p["U_o"], p["b_o"]))
    c_new = f_t * c_t + i_t * g_t
    h_new = o_t * jnp.tanh(c_new)
    return h_new, c_new


if __name__ == "__main__":
    batch = 8          # matches the 8-sublane vreg height
    input_size = 16
    hidden_size = 32   # 4H = 128 -> lane-dense fused gate matmul output

    key = jax.random.PRNGKey(0)
    k_x, k_h, k_c, k_p = jax.random.split(key, 4)

    x_t = jax.random.normal(k_x, (batch, input_size), jnp.float32)
    h_t = jax.random.normal(k_h, (batch, hidden_size), jnp.float32)
    c_t = jax.random.normal(k_c, (batch, hidden_size), jnp.float32)
    params = init_params(k_p, input_size, hidden_size)

    # Compute the reference first (c_t is aliased into the kernel's c output).
    h_ref, c_ref = lstm_cell_reference(x_t, h_t, c_t, params)
    jax.block_until_ready((h_ref, c_ref))

    h_new, c_new = lstm_cell(x_t, h_t, c_t, params)
    jax.block_until_ready((h_new, c_new))

    assert jnp.allclose(h_new, h_ref, atol=1e-5, rtol=1e-5), "h mismatch"
    assert jnp.allclose(c_new, c_ref, atol=1e-5, rtol=1e-5), "c mismatch"

    print("KERNEL_OK")
</pallas_src>

<mosaic_0001>
module attributes {stable_mosaic.version = 11 : i64} {
  func.func @lstm_cell_kernel(%arg0: memref<8x48xf32, #tpu.memory_space<vmem>>, %arg1: memref<8x32xf32, #tpu.memory_space<vmem>>, %arg2: memref<48x128xf32, #tpu.memory_space<vmem>>, %arg3: memref<1x128xf32, #tpu.memory_space<vmem>>, %arg4: memref<8x32xf32, #tpu.memory_space<vmem>>, %arg5: memref<8x32xf32, #tpu.memory_space<vmem>>) attributes {dimension_semantics = [], scalar_prefetch = 0 : i64, scratch_operands = 0 : i64, tpu.core_type = #tpu.core_type<tc>} {
    %c0 = arith.constant 0 : index
    %c0_0 = arith.constant 0 : index
    %0 = vector.load %arg0[%c0, %c0_0] : memref<8x48xf32, #tpu.memory_space<vmem>>, vector<8x48xf32>
    %c0_1 = arith.constant 0 : index
    %c0_2 = arith.constant 0 : index
    %1 = vector.load %arg1[%c0_1, %c0_2] : memref<8x32xf32, #tpu.memory_space<vmem>>, vector<8x32xf32>
    %c0_3 = arith.constant 0 : index
    %c0_4 = arith.constant 0 : index
    %2 = vector.load %arg2[%c0_3, %c0_4] : memref<48x128xf32, #tpu.memory_space<vmem>>, vector<48x128xf32>
    %cst = arith.constant dense<0.000000e+00> : vector<8x128xf32>
    %3 = tpu.matmul %0, %2, %cst {dimension_numbers = #tpu.dot_dimension_numbers<[1], [0], [0], [1], [0, 0, 1, 1], [], []>} : vector<8x48xf32>, vector<48x128xf32>, vector<8x128xf32> -> vector<8x128xf32>
    %c0_5 = arith.constant 0 : index
    %c0_6 = arith.constant 0 : index
    %4 = vector.load %arg3[%c0_5, %c0_6] : memref<1x128xf32, #tpu.memory_space<vmem>>, vector<1x128xf32>
    %5 = vector.broadcast %4 : vector<1x128xf32> to vector<8x128xf32>
    %6 = arith.addf %3, %5 : vector<8x128xf32>
    %7 = vector.extract_strided_slice %6 {offsets = [0, 0], sizes = [8, 32], strides = [1, 1]} : vector<8x128xf32> to vector<8x32xf32>
    %8 = arith.negf %7 : vector<8x32xf32>
    %9 = math.exp %8 : vector<8x32xf32>
    %cst_7 = arith.constant 1.000000e+00 : f32
    %10 = vector.broadcast %cst_7 : f32 to vector<8x32xf32>
    %11 = arith.addf %10, %9 : vector<8x32xf32>
    %12 = arith.divf %10, %11 : vector<8x32xf32>
    %13 = vector.extract_strided_slice %6 {offsets = [0, 32], sizes = [8, 32], strides = [1, 1]} : vector<8x128xf32> to vector<8x32xf32>
    %14 = arith.negf %13 : vector<8x32xf32>
    %15 = math.exp %14 : vector<8x32xf32>
    %cst_8 = arith.constant 1.000000e+00 : f32
    %16 = vector.broadcast %cst_8 : f32 to vector<8x32xf32>
    %17 = arith.addf %16, %15 : vector<8x32xf32>
    %18 = arith.divf %16, %17 : vector<8x32xf32>
    %19 = vector.extract_strided_slice %6 {offsets = [0, 64], sizes = [8, 32], strides = [1, 1]} : vector<8x128xf32> to vector<8x32xf32>
    %20 = math.tanh %19 : vector<8x32xf32>
    %21 = vector.extract_strided_slice %6 {offsets = [0, 96], sizes = [8, 32], strides = [1, 1]} : vector<8x128xf32> to vector<8x32xf32>
    %22 = arith.negf %21 : vector<8x32xf32>
    %23 = math.exp %22 : vector<8x32xf32>
    %cst_9 = arith.constant 1.000000e+00 : f32
    %24 = vector.broadcast %cst_9 : f32 to vector<8x32xf32>
    %25 = arith.addf %24, %23 : vector<8x32xf32>
    %26 = arith.divf %24, %25 : vector<8x32xf32>
    %27 = arith.mulf %18, %1 : vector<8x32xf32>
    %28 = arith.mulf %12, %20 : vector<8x32xf32>
    %29 = arith.addf %27, %28 : vector<8x32xf32>
    %30 = math.tanh %29 : vector<8x32xf32>
    %31 = arith.mulf %26, %30 : vector<8x32xf32>
    %c0_10 = arith.constant 0 : index
    %c0_11 = arith.constant 0 : index
    %32 = vector.load %arg4[%c0_10, %c0_11] : memref<8x32xf32, #tpu.memory_space<vmem>>, vector<8x32xf32>
    tpu.vector_store %arg4[%c0_10, %c0_11], %31 {strides = array<i32>} : memref<8x32xf32, #tpu.memory_space<vmem>>, vector<8x32xf32>,
    %c0_12 = arith.constant 0 : index
    %c0_13 = arith.constant 0 : index
    %33 = vector.load %arg5[%c0_12, %c0_13] : memref<8x32xf32, #tpu.memory_space<vmem>>, vector<8x32xf32>
    tpu.vector_store %arg5[%c0_12, %c0_13], %29 {strides = array<i32>} : memref<8x32xf32, #tpu.memory_space<vmem>>, vector<8x32xf32>,
    return
  }
}

</mosaic_0001>

<llo_original>
// kernel: tpu_custom_call.1
$region0: #{tpu_custom_call.1}
  #allocation0 [shape = 'u32[]', space=smem, size = 0x4, offset = 0x4, fixed_abs, tag = 'smem constant byte address 0x4 - core index']
  #allocation1 [shape = 'u32[144,128]{1,0:T(1,128)}', space=vmem, size = 0x12000, scoped, tag = 'internal scratch']
  %s0 = inlined_call_operand.vmem [shape: f32[8,48], index: 0, kind: input, shape index: {}]
  %s1 = inlined_call_operand.hbm [shape: f32[8,32], index: 1, kind: input, shape index: {}, may-alias: {1,5}]
  %s2 = inlined_call_operand.hbm [shape: f32[48,128], index: 2, kind: input, shape index: {}]
  %s3 = inlined_call_operand.vmem [shape: f32[1,128], index: 3, kind: input, shape index: {}]
  %s4 = inlined_call_operand.hbm [shape: f32[8,32], index: 4, kind: output, shape index: {0}]
  %s5 = inlined_call_operand.hbm [shape: f32[8,32], index: 5, kind: output, shape index: {1}, may-alias: {1,5}]
  %6 = xla_tuple %s4, %s5
  %s7 = sld [smem:[#allocation0]]
  $region42: #{tpu_custom_call.1} parent=0
    _
  %s9 = ssub.s32 1, %s7
  %s10 = scalar_select 0, %s9, %s7
  $region1: #{tpu_custom_call.1} parent=0
    #allocation2 [shape = 'u8[4096]{0}', space=vmem, size = 0x1000, scoped, tag = 'input window, operand 1, single buffered']
    #allocation3 [shape = 's32[1]{0}', space=sflag, size = 0x4, scoped, tag = 'scoped memory for tpu_custom_call.1']
    #allocation4 [shape = 's32[1]{0}', space=sflag, size = 0x4, scoped, tag = 'scoped memory for tpu_custom_call.1']
    #allocation5 [shape = 'u8[24576]{0}', space=vmem, size = 0x6000, scoped, tag = 'input window, operand 2, single buffered']
    #allocation6 [shape = 's32[1]{0}', space=sflag, size = 0x4, scoped, tag = 'scoped memory for tpu_custom_call.1']
    #allocation7 [shape = 'u8[4096]{0}', space=vmem, size = 0x1000, scoped, tag = 'output window, operand 0, single buffered']
    #allocation8 [shape = 'u8[4096]{0}', space=vmem, size = 0x1000, scoped, tag = 'output window, operand 1, single buffered']
    #allocation9 [shape = 's32[1]{0}', space=sflag, size = 0x4, scoped, tag = 'scoped memory for tpu_custom_call.1']
    %11 = vsyncpa [#allocation3], 0
    %12 = vsyncpa [#allocation6], 0
    %13 = vsyncpa [#allocation4], 0
    %14 = vsyncpa [#allocation9], 0
    // Predicated region
    $region2: #{tpu_custom_call.1} parent=1 // pred_check
      _
    $region3: #{tpu_custom_call.1} parent=1 // pred_check_branch
      %16 = sbr.rel (0) target = $region5
    $region4: #{tpu_custom_call.1} parent=1 // pred_region
      _
    $region5: #{tpu_custom_call.1} parent=1 // pred_fallthru
      _
    // Predicated region
    $region6: #{tpu_custom_call.1} parent=1 // pred_check
      _
    $region7: #{tpu_custom_call.1} parent=1 // pred_check_branch
      %18 = sbr.rel (0) target = $region9
    $region8: #{tpu_custom_call.1} parent=1 // pred_region
      %s20 = ssub.s32 128, 128
      %21 = vsyncadd [#allocation3], %s20
      %s23 = sshll.u32 [#allocation2], 4
      %s24 = int_to_ptr.vmem [resolvable:$true] %s23
      %26 = dma.hbm_to_vmem [thread:$0]  %s1, 128, %s24, [#allocation3]
    $region9: #{tpu_custom_call.1} parent=1 // pred_fallthru
      _
    // Predicated region
    $region10: #{tpu_custom_call.1} parent=1 // pred_check
      _
    $region11: #{tpu_custom_call.1} parent=1 // pred_check_branch
      %28 = sbr.rel (0) target = $region13
    $region12: #{tpu_custom_call.1} parent=1 // pred_region
      %s30 = ssub.s32 768, 768
      %31 = vsyncadd [#allocation6], %s30
      %s32 = sshll.u32 [#allocation5], 4
      %s33 = int_to_ptr.vmem [resolvable:$true] %s32
      %38 = dma.hbm_to_vmem [thread:$0]  %s2, 768, %s33, [#allocation6], 128, 128, 8
    $region13: #{tpu_custom_call.1} parent=1 // pred_fallthru
      _
    // Predicated region
    $region14: #{tpu_custom_call.1} parent=1 // pred_check
      _
    $region15: #{tpu_custom_call.1} parent=1 // pred_check_branch
      %40 = sbr.rel (0) target = $region17
    $region16: #{tpu_custom_call.1} parent=1 // pred_region
      _
    $region17: #{tpu_custom_call.1} parent=1 // pred_fallthru
      _
    // Predicated region
    $region18: #{tpu_custom_call.1} parent=1 // pred_check
      _
    $region19: #{tpu_custom_call.1} parent=1 // pred_check_branch
      %42 = sbr.rel (0) target = $region21
    $region20: #{tpu_custom_call.1} parent=1 // pred_region
      %43 = dma.done [#allocation3], 128
    $region21: #{tpu_custom_call.1} parent=1 // pred_fallthru
      _
    // Predicated region
    $region22: #{tpu_custom_call.1} parent=1 // pred_check
      _
    $region23: #{tpu_custom_call.1} parent=1 // pred_check_branch
      %45 = sbr.rel (0) target = $region25
    $region24: #{tpu_custom_call.1} parent=1 // pred_region
      %46 = dma.done [#allocation6], 768
    $region25: #{tpu_custom_call.1} parent=1 // pred_fallthru
      _
    %v47 = vld [vmem:[%s0] sm:$0xff]
    %v48 = vld [vmem:[#allocation2] sm:$0xff]
    %v49 = vld [vmem:[#allocation5] sm:$0xff]
    %v50 = vld [vmem:[#allocation5 + $0x8] sm:$0xff]
    %v51 = vld [vmem:[#allocation5 + $0x10] sm:$0xff]
    %v52 = vld [vmem:[#allocation5 + $0x18] sm:$0xff]
    %v53 = vld [vmem:[#allocation5 + $0x20] sm:$0xff]
    %v54 = vld [vmem:[#allocation5 + $0x28] sm:$0xff]
    %v55 = vld [vmem:[%s3] sm:$0x1]
    %v57 = vlaneseq
    %v58 = vshrl.u32 %v57, 7
    %v59 = vsub.s32 0, %v58
    %v60 = vrot.slane %v55, %v59
    %vm62 = vcmask 392192
    %v64 = vsel %vm62, %v47, 0
    %66 = vmatprep.subr.mxu0 0.0
    %67 = vmatpush1.msra.mxu0 %v49
    %68 = vmatprep.subr.mxu0 0.0
    %69 = vmatpush1.msra.mxu0 %v50
    %70 = vmatprep.subr.mxu0 0.0
    %71 = vmatpush1.msra.mxu0 %v51
    %72 = vmatprep.subr.mxu0 0.0
    %73 = vmatpush1.msra.mxu0 %v52
    %74 = vmatprep.subr.mxu0 0.0
    %75 = vmatpush1.msra.mxu0 %v53
    %76 = vmatprep.subr.mxu0 0.0
    %77 = vmatpush1.msra.mxu0 %v54
    %78 = vmatprep.subr.mxu0 0.0
    %79 = vmatpush1.msra.mxu0 0.0
    %80 = vmatprep.subr.mxu0 0.0
    %81 = vmatpush1.msra.mxu0 0.0
    %82 = vmatprep.subr.mxu0 0.0
    %83 = vmatpush1.msra.mxu0 0.0
    %84 = vmatprep.subr.mxu0 0.0
    %85 = vmatpush1.msra.mxu0 0.0
    %86 = vmatprep.subr.mxu0 0.0
    %87 = vmatpush1.msra.mxu0 0.0
    %88 = vmatprep.subr.mxu0 0.0
    %89 = vmatpush1.msra.mxu0 0.0
    %90 = vmatprep.subr.mxu0 0.0
    %91 = vmatpush1.msra.mxu0 0.0
    %92 = vmatprep.subr.mxu0 0.0
    %93 = vmatpush1.msra.mxu0 0.0
    %94 = vmatprep.subr.mxu0 0.0
    %95 = vmatpush1.msra.mxu0 0.0
    %96 = vmatprep.subr.mxu0 0.0
    %97 = vmatpush1.msra.mxu0 0.0
    %98 = vmatprep.subr.mxu0 0.0
    %99 = vmatpush1.msra.mxu0 0.0
    %100 = vmatprep.subr.mxu0 0.0
    %101 = vmatpush1.msra.mxu0 0.0
    %102 = vmatprep.subr.mxu0 0.0
    %103 = vmatpush1.msra.mxu0 0.0
    %104 = vmatprep.subr.mxu0 0.0
    %105 = vmatpush1.msra.mxu0 0.0
    %106 = vmatprep.subr.mxu0 0.0
    %107 = vmatpush1.msra.mxu0 0.0
    %108 = vmatprep.subr.mxu0 0.0
    %109 = vmatpush1.msra.mxu0 0.0
    %110 = vmatprep.subr.mxu0 0.0
    %111 = vmatpush1.msra.mxu0 0.0
    %112 = vmatprep.subr.mxu0 0.0
    %113 = vmatpush1.msra.mxu0 0.0
    %114 = vmatprep.subr.mxu0 0.0
    %115 = vmatpush1.msra.mxu0 0.0
    %116 = vmatprep.subr.mxu0 0.0
    %117 = vmatpush1.msra.mxu0 0.0
    %118 = vmatprep.subr.mxu0 0.0
    %119 = vmatpush1.msra.mxu0 0.0
    %120 = vmatprep.subr.mxu0 0.0
    %121 = vmatpush1.msra.mxu0 0.0
    %122 = vmatprep.subr.mxu0 0.0
    %123 = vmatpush1.msra.mxu0 0.0
    %124 = vmatprep.subr.mxu0 0.0
    %125 = vmatpush1.msra.mxu0 0.0
    %126 = vmatprep.subr.mxu0 0.0
    %127 = vmatpush1.msra.mxu0 0.0
    %128 = vmatprep.subr.mxu0 0.0
    %129 = vmatpush1.msra.mxu0 0.0
    %130 = vmatprep.mubr.f32.mxu0 0.0
    %131 = vmatmul.mubr.f32.gmra.mrb[0].mxu0 %v64
    %v132 = vpop.f32.mrb[0].mxu0
    %v133 = vadd.f32 %v60, %v132
    %v134 = vpop.f32.mrb[0].mxu0
    %135 = vdwg.mxu0
    %v136 = vxor.u32 %v133, 2147483648
    %v137 = vmul.f32 %v136, 1.442695
    %v138 = vpow.pop %v137
    %v139 = vadd.f32 %v138, 1.0
    %v140 = vrcp.pop %v139
    %v141 = vmul.f32 1.0, %v140
    %v142 = vtanh.pop %v133
    %144 = vrot.lane.b32.xlu0 %v48, 32
    %v145 = vpop.permute.xlu0 %144
    %v147 = vmul.f32 %v141, %v145
    %149 = vrot.lane.b32.xlu0 %v142, 64
    %v150 = vpop.permute.xlu0 %149
    %v152 = vmul.f32 %v141, %v150
    %154 = vrot.lane.b32.xlu0 %v152, 32
    %v155 = vpop.permute.xlu0 %154
    %v157 = vadd.f32 %v147, %v155
    %v158 = vtanh.pop %v157
    %160 = vrot.lane.b32.xlu0 %v158, 64
    %v161 = vpop.permute.xlu0 %160
    %v163 = vmul.f32 %v141, %v161
    %165 = vrot.lane.b32.xlu0 %v163, 32
    %v166 = vpop.permute.xlu0 %165
    %vm168 = vcmask 261120
    %169 = vst.msk [vmem:[#allocation7] sm:$0xff] %vm168, %v166
    %171 = vrot.lane.b32.xlu0 %v157, 96
    %v172 = vpop.permute.xlu0 %171
    %174 = vst.msk [vmem:[#allocation8] sm:$0xff] %vm168, %v172
    // Predicated region
    $region26: #{tpu_custom_call.1} parent=1 // pred_check
      _
    $region27: #{tpu_custom_call.1} parent=1 // pred_check_branch
      %176 = sbr.rel (0) target = $region29
    $region28: #{tpu_custom_call.1} parent=1 // pred_region
      %s178 = ssub.s32 128, 128
      %179 = vsyncadd [#allocation4], %s178
      %s181 = sshll.u32 [#allocation7], 4
      %s182 = int_to_ptr.vmem [resolvable:$true] %s181
      %184 = dma.vmem_to_hbm [thread:$0]  %s182, 128, %s4, [#allocation4]
    $region29: #{tpu_custom_call.1} parent=1 // pred_fallthru
      _
    // Predicated region
    $region30: #{tpu_custom_call.1} parent=1 // pred_check
      _
    $region31: #{tpu_custom_call.1} parent=1 // pred_check_branch
      %186 = sbr.rel (0) target = $region33
    $region32: #{tpu_custom_call.1} parent=1 // pred_region
      %s188 = ssub.s32 128, 128
      %189 = vsyncadd [#allocation9], %s188
      %s191 = sshll.u32 [#allocation8], 4
      %s192 = int_to_ptr.vmem [resolvable:$true] %s191
      %194 = dma.vmem_to_hbm [thread:$0]  %s192, 128, %s5, [#allocation9]
    $region33: #{tpu_custom_call.1} parent=1 // pred_fallthru
      _
    // Predicated region
    $region34: #{tpu_custom_call.1} parent=1 // pred_check
      _
    $region35: #{tpu_custom_call.1} parent=1 // pred_check_branch
      %196 = sbr.rel (0) target = $region37
    $region36: #{tpu_custom_call.1} parent=1 // pred_region
      %197 = dma.done [#allocation4], 128
    $region37: #{tpu_custom_call.1} parent=1 // pred_fallthru
      _
    // Predicated region
    $region38: #{tpu_custom_call.1} parent=1 // pred_check
      _
    $region39: #{tpu_custom_call.1} parent=1 // pred_check_branch
      %199 = sbr.rel (0) target = $region41
    $region40: #{tpu_custom_call.1} parent=1 // pred_region
      %200 = dma.done [#allocation9], 128
    $region41: #{tpu_custom_call.1} parent=1 // pred_fallthru
      _
    %201 = vsyncpa [#allocation3], 1
    %202 = vsyncpa [#allocation6], 1
    %203 = vsyncpa [#allocation4], 1
    %204 = vsyncpa [#allocation9], 1

</llo_original>
